<compile_context>
chip_gen: v5e
topology: v5e:2x2
jax: 0.10.0
libtpu: 0.0.40
codegen_flags: <defaults>
</compile_context>

<pallas_src>
import functools

import jax
import jax.numpy as jnp
from jax import lax
from jax.experimental import pallas as pl
from jax.experimental.pallas import tpu as pltpu

LANE = 128
SUBLANE = 8
TARGET_TILE_BYTES = 2 * 1024 * 1024       # ~2 MiB streamed tile (review: 2048-4096 rows @ 128 lanes)
FAST_PATH_MAX_BYTES = 4 * 1024 * 1024     # per-buffer footprint for fused path (2 bufs -> 8 MiB, v5e-safe)
MAX_NATURAL_ROW_BYTES = 32 * 1024         # keep the (8, C) phase-1 accumulator <= 256 KiB
NUM_PARTIALS = 2                          # phase-1 partial sums (both TensorCores on v7x)


def _cdiv(a, b):
    return -(-a // b)


def _round_up(v, m):
    return _cdiv(v, m) * m


def _round_down(v, m):
    return (v // m) * m


# ---------------------------------------------------------------------------
# Kernels
# ---------------------------------------------------------------------------
def _fused_center_kernel(x_ref, o_ref, *, inv_n):
    """Whole problem resident in VMEM: mean + subtract in a single pass."""
    x = x_ref[...].astype(jnp.float32)
    mean = jnp.sum(x) * inv_n
    o_ref[...] = (x - mean).astype(o_ref.dtype)


def _partial_sum_kernel(x_ref, out_ref, acc_ref, *, valid_rows, tm, lanes,
                        tiles_per_core):
    """Per-core partial sum over its slice of row tiles.

    grid = (NUM_PARTIALS, tiles_per_core); the outer axis is "parallel" so the
    two partials land on different TensorCores on v7x.  acc_ref is an
    (8, lanes) f32 scratch updated with plain vreg adds; the lane collapse to
    the (8, 128) output block happens only at the last step.
    """
    i = pl.program_id(1)

    @pl.when(i == 0)
    def _():
        acc_ref[...] = jnp.zeros_like(acc_ref)

    # Unclamped global tile id (the index_map clamps OOB tiles; duplicated /
    # partial tiles are zeroed here by the row mask instead).
    t = pl.program_id(0) * tiles_per_core + i
    row_ids = t * tm + lax.broadcasted_iota(jnp.int32, (tm, 1), 0)
    x = x_ref[...].astype(jnp.float32)
    x = jnp.where(row_ids < valid_rows, x, 0.0)
    # (tm, lanes) -> (tm//8, 8, lanes) is a layout-preserving row split; the
    # axis-0 reduction is pure VPU vreg adds, fully hidden under the DMA.
    acc_ref[...] += jnp.sum(x.reshape(tm // SUBLANE, SUBLANE, lanes), axis=0)

    @pl.when(i == tiles_per_core - 1)
    def _():
        total = acc_ref[:, 0:LANE]
        for j in range(1, lanes // LANE):        # static, <= 64 unrolled adds
            total = total + acc_ref[:, j * LANE:(j + 1) * LANE]
        out_ref[...] = total


def _subtract_mean_kernel(part_ref, x_ref, o_ref, *, inv_n):
    """Elementwise X - mean.  The mean is recomputed from the tiny partial-sum
    array each step (a few hundred ops, hidden under the HBM stream)."""
    mean = jnp.sum(part_ref[...]) * inv_n
    o_ref[...] = (x_ref[...].astype(jnp.float32) - mean).astype(o_ref.dtype)


# ---------------------------------------------------------------------------
# Wrapper
# ---------------------------------------------------------------------------
def centered_layer(x):
    """Pallas implementation of CenteredLayer.forward: X - X.mean()."""
    orig_shape = x.shape
    dtype = x.dtype
    n = x.size
    if n == 0:
        return x
    itemsize = jnp.dtype(dtype).itemsize
    inv_n = 1.0 / n

    # Free 2-D view: collapse every dim except the last one (layout-preserving).
    if x.ndim == 0:
        view = x.reshape(1, 1)
    elif x.ndim == 1:
        view = x.reshape(1, -1)
    else:
        view = x.reshape(-1, orig_shape[-1])
    r_rows, r_cols = view.shape

    # ---- fast path: single fused kernel, everything resident in VMEM -------
    footprint = _round_up(r_rows, 32) * _round_up(r_cols, LANE) * itemsize
    if footprint <= FAST_PATH_MAX_BYTES:
        out = pl.pallas_call(
            functools.partial(_fused_center_kernel, inv_n=inv_n),
            out_shape=jax.ShapeDtypeStruct(view.shape, dtype),
        )(view)
        return out.reshape(orig_shape)

    # ---- gridded HBM-streaming path -----------------------------------------
    # Choose a lane-dense 2-D working view (last dim multiple of 128).
    pad = 0
    if r_cols % LANE == 0 and r_cols * itemsize <= MAX_NATURAL_ROW_BYTES:
        work = view                          # free view, no pad / relayout
        rows_w, cols_w = r_rows, r_cols
    else:
        # TODO(synk): last dims that are not a multiple of 128 fall back to a
        # flatten (+ <=127-element zero pad) and a possible relayout copy; a
        # fully copy-free ragged path would need masked lane stores.
        flat = x.reshape(-1)
        pad = (-n) % LANE
        if pad:
            flat = jnp.pad(flat, (0, pad))   # zeros: leave the sum unchanged
        cols_w = LANE
        rows_w = flat.size // LANE
        work = flat.reshape(rows_w, cols_w)

    tm = max(SUBLANE,
             _round_down(min(TARGET_TILE_BYTES // (cols_w * itemsize), rows_w),
                         SUBLANE))
    num_tiles = _cdiv(rows_w, tm)
    ncores = NUM_PARTIALS if num_tiles >= NUM_PARTIALS else 1
    tiles_per_core = _cdiv(num_tiles, ncores)

    def x_map(c, i):
        t = c * tiles_per_core + i
        return (jnp.minimum(t, num_tiles - 1), 0)

    # Phase 1: per-core partial sums (both TCs on v7x via "parallel" axis).
    partials = pl.pallas_call(
        functools.partial(_partial_sum_kernel, valid_rows=rows_w, tm=tm,
                          lanes=cols_w, tiles_per_core=tiles_per_core),
        out_shape=jax.ShapeDtypeStruct((ncores, SUBLANE, LANE), jnp.float32),
        grid=(ncores, tiles_per_core),
        in_specs=[pl.BlockSpec((tm, cols_w), x_map)],
        out_specs=pl.BlockSpec((None, SUBLANE, LANE), lambda c, i: (c, 0, 0)),
        scratch_shapes=[pltpu.VMEM((SUBLANE, cols_w), jnp.float32)],
        compiler_params=pltpu.CompilerParams(
            dimension_semantics=("parallel", "arbitrary")),
        cost_estimate=pl.CostEstimate(
            flops=n, transcendentals=0,
            bytes_accessed=rows_w * cols_w * itemsize),
    )(work)

    # Phase 2: elementwise subtract, fully parallel streaming pass.
    out2d = pl.pallas_call(
        functools.partial(_subtract_mean_kernel, inv_n=inv_n),
        out_shape=jax.ShapeDtypeStruct((rows_w, cols_w), dtype),
        grid=(num_tiles,),
        in_specs=[
            pl.BlockSpec((ncores, SUBLANE, LANE), lambda i: (0, 0, 0)),
            pl.BlockSpec((tm, cols_w), lambda i: (i, 0)),
        ],
        out_specs=pl.BlockSpec((tm, cols_w), lambda i: (i, 0)),
        compiler_params=pltpu.CompilerParams(
            dimension_semantics=("parallel",)),
        cost_estimate=pl.CostEstimate(
            flops=2 * n, transcendentals=0,
            bytes_accessed=2 * rows_w * cols_w * itemsize),
    )(partials, work)

    if work is view:
        return out2d.reshape(orig_shape)
    out_flat = out2d.reshape(-1)
    if pad:
        out_flat = out_flat[:n]
    return out_flat.reshape(orig_shape)


# ---------------------------------------------------------------------------
if __name__ == "__main__":
    key = jax.random.PRNGKey(0)
    ks = jax.random.split(key, 4)

    # Small NCHW input matching the PyTorch module (fast fused path).
    x = jax.random.normal(ks[0], (2, 4, 16, 16), dtype=jnp.float32)
    y = jax.block_until_ready(centered_layer(x))
    assert y.shape == x.shape and y.dtype == x.dtype
    assert jnp.allclose(y, x - jnp.mean(x), atol=1e-5, rtol=1e-5)

    # Ragged small shape (fast path, non-lane-aligned last dim).
    x2 = jax.random.normal(ks[1], (3, 5, 7), dtype=jnp.float32)
    y2 = jax.block_until_ready(centered_layer(x2))
    assert jnp.allclose(y2, x2 - jnp.mean(x2), atol=1e-5, rtol=1e-5)

    # Larger input: gridded lane-dense path (C % 128 == 0), partial last row
    # tile (row masking) and two-partial-sum phase 1.
    x3 = jax.random.normal(ks[2], (3000, 640), dtype=jnp.float32)
    y3 = jax.block_until_ready(centered_layer(x3))
    assert jnp.allclose(y3, x3 - jnp.mean(x3), atol=1e-4, rtol=1e-4)

    # Larger input with a non-lane-aligned last dim: flatten fallback path.
    x4 = jax.random.normal(ks[3], (512, 4, 32, 64), dtype=jnp.float32)
    y4 = jax.block_until_ready(centered_layer(x4))
    assert jnp.allclose(y4, x4 - jnp.mean(x4), atol=1e-4, rtol=1e-4)

    print("KERNEL_OK")
</pallas_src>

<mosaic_0001>
module attributes {stable_mosaic.version = 11 : i64} {
  func.func @_fused_center_kernel(%arg0: memref<128x16xf32, #tpu.memory_space<vmem>>, %arg1: memref<128x16xf32, #tpu.memory_space<vmem>>) attributes {dimension_semantics = [], scalar_prefetch = 0 : i64, scratch_operands = 0 : i64, tpu.core_type = #tpu.core_type<tc>} {
    %c0 = arith.constant 0 : index
    %c0_0 = arith.constant 0 : index
    %0 = vector.load %arg0[%c0, %c0_0] : memref<128x16xf32, #tpu.memory_space<vmem>>, vector<128x16xf32>
    %1 = vector.shape_cast %0 : vector<128x16xf32> to vector<1x128x16xf32>
    %cst = arith.constant dense<0.000000e+00> : vector<1xf32>
    %2 = vector.multi_reduction <add>, %1, %cst [1, 2] : vector<1x128x16xf32> to vector<1xf32>
    %3 = vector.shape_cast %2 : vector<1xf32> to vector<1x1x1xf32>
    %4 = vector.extract %3[0, 0, 0] : f32 from vector<1x1x1xf32>
    %cst_1 = arith.constant 4.8828125E-4 : f32
    %5 = arith.mulf %4, %cst_1 : f32
    %6 = vector.broadcast %5 : f32 to vector<128x16xf32>
    %7 = arith.subf %0, %6 : vector<128x16xf32>
    %c0_2 = arith.constant 0 : index
    %c0_3 = arith.constant 0 : index
    %8 = vector.load %arg1[%c0_2, %c0_3] : memref<128x16xf32, #tpu.memory_space<vmem>>, vector<128x16xf32>
    tpu.vector_store %arg1[%c0_2, %c0_3], %7 {strides = array<i32>} : memref<128x16xf32, #tpu.memory_space<vmem>>, vector<128x16xf32>,
    return
  }
}

</mosaic_0001>

<llo_original>
// kernel: tpu_custom_call.1
$region0: #{tpu_custom_call.1}
  #allocation0 [shape = 'u32[]', space=smem, size = 0x4, offset = 0x4, fixed_abs, tag = 'smem constant byte address 0x4 - core index']
  #allocation1 [shape = 'u32[72,128]{1,0:T(1,128)}', space=vmem, size = 0x9000, scoped, tag = 'internal scratch']
  %s0 = inlined_call_operand.vmem [shape: f32[128,16], index: 0, kind: input, shape index: {}]
  %s1 = inlined_call_operand.vmem [shape: f32[128,16], index: 1, kind: output, shape index: {}]
  %s2 = sld [smem:[#allocation0]]
  $region14: #{tpu_custom_call.1} parent=0
    _
  %s4 = ssub.s32 1, %s2
  %s5 = scalar_select 0, %s4, %s2
  // Predicated region
  $region2: #{tpu_custom_call.1} parent=0 // pred_check
    _
  $region3: #{tpu_custom_call.1} parent=0 // pred_check_branch
    %7 = sbr.rel (0) target = $region5
  $region4: #{tpu_custom_call.1} parent=0 // pred_region
    _
  $region5: #{tpu_custom_call.1} parent=0 // pred_fallthru
    _
  %v8 = vld [vmem:[%s0] sm:$0xff]
  %v9 = vld [vmem:[%s0 + $0x8] sm:$0xff]
  %v10 = vld [vmem:[%s0 + $0x10] sm:$0xff]
  %v11 = vld [vmem:[%s0 + $0x18] sm:$0xff]
  %v12 = vld [vmem:[%s0 + $0x20] sm:$0xff]
  %v13 = vld [vmem:[%s0 + $0x28] sm:$0xff]
  %v14 = vld [vmem:[%s0 + $0x30] sm:$0xff]
  %v15 = vld [vmem:[%s0 + $0x38] sm:$0xff]
  %v16 = vld [vmem:[%s0 + $0x40] sm:$0xff]
  %v17 = vld [vmem:[%s0 + $0x48] sm:$0xff]
  %v18 = vld [vmem:[%s0 + $0x50] sm:$0xff]
  %v19 = vld [vmem:[%s0 + $0x58] sm:$0xff]
  %v20 = vld [vmem:[%s0 + $0x60] sm:$0xff]
  %v21 = vld [vmem:[%s0 + $0x68] sm:$0xff]
  %v22 = vld [vmem:[%s0 + $0x70] sm:$0xff]
  %v23 = vld [vmem:[%s0 + $0x78] sm:$0xff]
  %vm24 = vcmask 130048
  %v25 = vsel %vm24, %v8, 0.0
  %v26 = vsel %vm24, %v9, 0.0
  %v27 = vadd.f32 %v25, %v26
  %v28 = vsel %vm24, %v10, 0.0
  %v29 = vadd.f32 %v27, %v28
  %v30 = vsel %vm24, %v11, 0.0
  %v31 = vadd.f32 %v29, %v30
  %v32 = vsel %vm24, %v12, 0.0
  %v33 = vadd.f32 %v31, %v32
  %v34 = vsel %vm24, %v13, 0.0
  %v35 = vadd.f32 %v33, %v34
  %v36 = vsel %vm24, %v14, 0.0
  %v37 = vadd.f32 %v35, %v36
  %v38 = vsel %vm24, %v15, 0.0
  %v39 = vadd.f32 %v37, %v38
  %v40 = vsel %vm24, %v16, 0.0
  %v41 = vadd.f32 %v39, %v40
  %v42 = vsel %vm24, %v17, 0.0
  %v43 = vadd.f32 %v41, %v42
  %v44 = vsel %vm24, %v18, 0.0
  %v45 = vadd.f32 %v43, %v44
  %v46 = vsel %vm24, %v19, 0.0
  %v47 = vadd.f32 %v45, %v46
  %v48 = vsel %vm24, %v20, 0.0
  %v49 = vadd.f32 %v47, %v48
  %v50 = vsel %vm24, %v21, 0.0
  %v51 = vadd.f32 %v49, %v50
  %v52 = vsel %vm24, %v22, 0.0
  %v53 = vadd.f32 %v51, %v52
  %v54 = vsel %vm24, %v23, 0.0
  %v55 = vadd.f32 %v53, %v54
  %56 = vadd.xlane.f32.xlu0 %v55
  %v57 = vpop.xlane.xlu0 %56
  %v58 = vrot.slane %v57, 4
  %v59 = vadd.f32 %v57, %v58
  %v60 = vrot.slane %v59, 2
  %v61 = vadd.f32 %v59, %v60
  %v62 = vrot.slane %v61, 1
  %v63 = vadd.f32 %v61, %v62
  %s64 = vtos %v63
  %s65 = smul.f32 %s64, 0.00048828125
  %v66 = vstv %s65
  %v67 = vsub.f32 %v8, %v66
  %v68 = vsub.f32 %v9, %v66
  %v69 = vsub.f32 %v10, %v66
  %v70 = vsub.f32 %v11, %v66
  %v71 = vsub.f32 %v12, %v66
  %v72 = vsub.f32 %v13, %v66
  %v73 = vsub.f32 %v14, %v66
  %v74 = vsub.f32 %v15, %v66
  %v75 = vsub.f32 %v16, %v66
  %v76 = vsub.f32 %v17, %v66
  %v77 = vsub.f32 %v18, %v66
  %v78 = vsub.f32 %v19, %v66
  %v79 = vsub.f32 %v20, %v66
  %v80 = vsub.f32 %v21, %v66
  %v81 = vsub.f32 %v22, %v66
  %v82 = vsub.f32 %v23, %v66
  %83 = vst.msk [vmem:[%s1] sm:$0xff] %vm24, %v67
  %84 = vst.msk [vmem:[%s1 + $0x8] sm:$0xff] %vm24, %v68
  %85 = vst.msk [vmem:[%s1 + $0x10] sm:$0xff] %vm24, %v69
  %86 = vst.msk [vmem:[%s1 + $0x18] sm:$0xff] %vm24, %v70
  %87 = vst.msk [vmem:[%s1 + $0x20] sm:$0xff] %vm24, %v71
  %88 = vst.msk [vmem:[%s1 + $0x28] sm:$0xff] %vm24, %v72
  %89 = vst.msk [vmem:[%s1 + $0x30] sm:$0xff] %vm24, %v73
  %90 = vst.msk [vmem:[%s1 + $0x38] sm:$0xff] %vm24, %v74
  %91 = vst.msk [vmem:[%s1 + $0x40] sm:$0xff] %vm24, %v75
  %92 = vst.msk [vmem:[%s1 + $0x48] sm:$0xff] %vm24, %v76
  %93 = vst.msk [vmem:[%s1 + $0x50] sm:$0xff] %vm24, %v77
  %94 = vst.msk [vmem:[%s1 + $0x58] sm:$0xff] %vm24, %v78
  %95 = vst.msk [vmem:[%s1 + $0x60] sm:$0xff] %vm24, %v79
  %96 = vst.msk [vmem:[%s1 + $0x68] sm:$0xff] %vm24, %v80
  %97 = vst.msk [vmem:[%s1 + $0x70] sm:$0xff] %vm24, %v81
  %98 = vst.msk [vmem:[%s1 + $0x78] sm:$0xff] %vm24, %v82
  // Predicated region
  $region6: #{tpu_custom_call.1} parent=0 // pred_check
    _
  $region7: #{tpu_custom_call.1} parent=0 // pred_check_branch
    %100 = sbr.rel (0) target = $region9
  $region8: #{tpu_custom_call.1} parent=0 // pred_region
    _
  $region9: #{tpu_custom_call.1} parent=0 // pred_fallthru
    _
  // Predicated region
  $region10: #{tpu_custom_call.1} parent=0 // pred_check
    _
  $region11: #{tpu_custom_call.1} parent=0 // pred_check_branch
    %102 = sbr.rel (0) target = $region13
  $region12: #{tpu_custom_call.1} parent=0 // pred_region
    _
  $region13: #{tpu_custom_call.1} parent=0 // pred_fallthru
    _

</llo_original>
